<compile_context>
chip_gen: v7x
topology: tpu7x:2x2x1
jax: 0.10.0
libtpu: 0.0.40
codegen_flags: <defaults>
</compile_context>

<pallas_src>
import functools
import numpy as np
import jax
import jax.numpy as jnp
from jax import lax
from jax.experimental import pallas as pl
from jax.experimental.pallas import tpu as pltpu

# sqrt(re^2+im^2+eps): ~1e-6 amplitude bias near zero field values vs torch.abs().
_AMP_EPS = 1e-12
_SUBLANE = 8
_LANE = 128


def _round_up(x, m):
    return ((x + m - 1) // m) * m


def _pick_vmem_budgets():
    """(per-stream block bytes, vmem_limit_bytes) per TPU generation.

    v7x has 64 MiB physical VMEM shared with the XLA FFT working set -> keep
    2 MiB/stream blocks and ~36 MiB scoped cap.  v5e/v6e have 128 MiB physical
    -> 4 MiB/stream blocks and a 64 MiB scoped limit.  Unknown -> conservative.
    """
    phys = None
    try:
        phys = int(pltpu.get_tpu_info().vmem_capacity_bytes)
    except Exception:
        phys = None
    if phys is not None and phys > 64 * 1024 * 1024:      # v5e / v6e
        return 4 * 1024 * 1024, 64 * 1024 * 1024
    return 2 * 1024 * 1024, 36 * 1024 * 1024              # v7x or unknown


# ----------------------------------------------------------------------------
# Pallas kernel 1 (forward): fused ROI amplitude + scaled squared error.
#   Each grid block reduces its (TM, rw) tile to one partial sum written into
#   a lane-dense (8,128) output tile -> grid axis is "parallel" (megacore).
# ----------------------------------------------------------------------------
def _roi_loss_kernel(n_valid_rows, tm, s_ref, re_ref, im_ref, tgt_ref, part_ref):
    i = pl.program_id(0)
    s = s_ref[0, 0]
    re = re_ref[...]
    im = im_ref[...]
    tgt = tgt_ref[...]
    row = i * tm + lax.broadcasted_iota(jnp.int32, re.shape, 0)
    valid = row < n_valid_rows                       # mask sublane padding rows
    amp = jnp.sqrt(re * re + im * im + _AMP_EPS)
    diff = s * amp - tgt
    partial = jnp.sum(jnp.where(valid, diff * diff, 0.0))
    r0 = lax.broadcasted_iota(jnp.int32, (_SUBLANE, _LANE), 0) == 0
    c0 = lax.broadcasted_iota(jnp.int32, (_SUBLANE, _LANE), 1) == 0
    part_ref[...] = jnp.where(r0 & c0, partial, 0.0)  # partial at [0,0], rest 0


# ----------------------------------------------------------------------------
# Pallas kernel 2 (backward): fused d_re / d_im elementwise + per-block
#   sum(diff*amp) partial for the scale gradient.  rsqrt replaces sqrt+divide.
# ----------------------------------------------------------------------------
def _roi_grad_kernel(n_valid_rows, tm, s_ref, c_ref, re_ref, im_ref, tgt_ref,
                     dre_ref, dim_ref, part_ref):
    i = pl.program_id(0)
    s = s_ref[0, 0]
    c = c_ref[0, 0]                                   # = g * 2*s / n_total
    re = re_ref[...]
    im = im_ref[...]
    tgt = tgt_ref[...]
    row = i * tm + lax.broadcasted_iota(jnp.int32, re.shape, 0)
    valid = row < n_valid_rows
    sq = re * re + im * im + _AMP_EPS
    inv = lax.rsqrt(sq)                               # one EUP op
    amp = sq * inv
    diff = s * amp - tgt
    w = jnp.where(valid, c * diff * inv, 0.0)         # = c*diff/amp, masked
    dre_ref[...] = w * re
    dim_ref[...] = w * im
    partial = jnp.sum(jnp.where(valid, diff * amp, 0.0))
    r0 = lax.broadcasted_iota(jnp.int32, (_SUBLANE, _LANE), 0) == 0
    c0 = lax.broadcasted_iota(jnp.int32, (_SUBLANE, _LANE), 1) == 0
    part_ref[...] = jnp.where(r0 & c0, partial, 0.0)


def _make_roi_scaled_mse(n_valid_rows, rw, tm, r_pad, n_total, vmem_limit):
    """custom_vjp fused ROI loss L = mean((s*|re+i*im| - tgt)^2), fixed shapes.

    re/im/tgt are (r_pad, rw) f32 with r_pad a multiple of tm (tm % 8 == 0);
    the last block dim equals the full array dim so no array-level 128 padding
    is needed (Pallas masks the partial-lane stores itself).
    """
    num_blocks = r_pad // tm
    grid = (num_blocks,)
    vspec = pl.BlockSpec((tm, rw), lambda i: (i, 0))
    sspec = pl.BlockSpec((1, 1), lambda i: (0, 0),
                         memory_space=pltpu.MemorySpace.SMEM)
    pspec = pl.BlockSpec((_SUBLANE, _LANE), lambda i: (0, i))
    part_shape = jax.ShapeDtypeStruct((_SUBLANE, num_blocks * _LANE), jnp.float32)
    cparams = pltpu.CompilerParams(dimension_semantics=("parallel",),
                                   vmem_limit_bytes=vmem_limit)

    def fwd_call(s, re, im, tgt):
        s2 = jnp.reshape(jnp.asarray(s, jnp.float32), (1, 1))
        part = pl.pallas_call(
            functools.partial(_roi_loss_kernel, n_valid_rows, tm),
            out_shape=part_shape,
            grid=grid,
            in_specs=[sspec, vspec, vspec, vspec],
            out_specs=pspec,
            compiler_params=cparams,
        )(s2, re, im, tgt)
        return jnp.sum(part) / n_total

    def grad_call(s, coef, re, im, tgt):
        s2 = jnp.reshape(jnp.asarray(s, jnp.float32), (1, 1))
        c2 = jnp.reshape(jnp.asarray(coef, jnp.float32), (1, 1))
        dre, dim_, part = pl.pallas_call(
            functools.partial(_roi_grad_kernel, n_valid_rows, tm),
            out_shape=(jax.ShapeDtypeStruct((r_pad, rw), jnp.float32),
                       jax.ShapeDtypeStruct((r_pad, rw), jnp.float32),
                       part_shape),
            grid=grid,
            in_specs=[sspec, sspec, vspec, vspec, vspec],
            out_specs=(vspec, vspec, pspec),
            compiler_params=cparams,
        )(s2, c2, re, im, tgt)
        return dre, dim_, jnp.sum(part)

    @jax.custom_vjp
    def roi_scaled_mse(s, re, im, tgt):
        return fwd_call(s, re, im, tgt)

    def _fwd(s, re, im, tgt):
        return fwd_call(s, re, im, tgt), (s, re, im, tgt)

    def _bwd(res, g):
        s, re, im, tgt = res
        g = jnp.asarray(g, jnp.float32)
        coef = g * (2.0 * s) / n_total
        dre, dim_, dsum = grad_call(s, coef, re, im, tgt)
        ds = g * (2.0 / n_total) * dsum
        # tgt cotangent is never used downstream -> dead-code-eliminated by XLA.
        return ds, dre, dim_, jnp.zeros_like(tgt)

    roi_scaled_mse.defvjp(_fwd, _bwd)
    return roi_scaled_mse


# ----------------------------------------------------------------------------
# ASM transfer function (precomputed_H_exp equivalent) — parameter setup glue.
# ----------------------------------------------------------------------------
def make_asm_transfer(H, W, feature_size, wavelength, prop_dist):
    """exp(i*kz*z) with evanescent cutoff; returns (1,1,H,W) complex64.

    TODO(synk): linear-conv 2x zero padding + Matsushima band-limiting of the
                original propagation_ASM are omitted (circular-conv ASM here).
    """
    dy, dx = feature_size
    fy = np.fft.fftfreq(H, d=dy).astype(np.float64)
    fx = np.fft.fftfreq(W, d=dx).astype(np.float64)
    FY, FX = np.meshgrid(fy, fx, indexing="ij")
    arg = 1.0 / wavelength ** 2 - FX ** 2 - FY ** 2
    prop_mask = (arg > 0).astype(np.float64)
    kz = 2.0 * np.pi * np.sqrt(np.maximum(arg, 0.0))
    ph = np.mod(kz * prop_dist, 2.0 * np.pi)
    h = (prop_mask * np.exp(1j * ph)).astype(np.complex64)
    return jnp.asarray(h).reshape(1, 1, H, W)


# ----------------------------------------------------------------------------
# Optimization loop (stochastic_gradient_descent equivalent, citl=False)
# ----------------------------------------------------------------------------
def run_sgd(init_phase, target_amp, roi_res, prop_dist, wavelength,
            feature_size, num_iters=20, lr=0.01, lr_s=0.003, s0=1.0):
    # TODO(synk): original uses torch.optim.Adam; plain gradient descent here.
    B, C, H, W = target_amp.shape
    rh, rw = roi_res
    sh, sw = (H - rh) // 2, (W - rw) // 2

    hc = make_asm_transfer(H, W, feature_size, wavelength, prop_dist)

    block_bytes, vmem_limit = _pick_vmem_budgets()

    # Sublane-dense ROI layout: (B*C*rh, rw); row blocks of TM (multiple of 8)
    # sized so one f32 tile (with internal 128-lane padding) fits block_bytes.
    n_rows = B * C * rh
    n_total = n_rows * rw
    lane_padded = _round_up(rw, _LANE)
    cap_rows = max(_SUBLANE,
                   (block_bytes // (4 * lane_padded)) // _SUBLANE * _SUBLANE)
    tm = min(_round_up(n_rows, _SUBLANE), cap_rows)
    r_pad = _round_up(n_rows, tm)

    roi_loss = _make_roi_scaled_mse(n_rows, rw, tm, r_pad, n_total, vmem_limit)

    def pad_rows(x):
        if x.shape[0] == r_pad:
            return x
        return jnp.pad(x, ((0, r_pad - x.shape[0]), (0, 0)))

    tgt_roi = target_amp[:, :, sh:sh + rh, sw:sw + rw].astype(jnp.float32)
    tgt_roi = pad_rows(tgt_roi.reshape(n_rows, rw))

    def loss_fn(phase, s, tgt):
        u = jnp.exp(1j * phase.astype(jnp.float32))        # phase-only SLM field
        # TODO(synk): FFT/IFFT stay in jnp.fft (no Pallas FFT primitive); the
        # freq-domain filter U*H is one fused complex64 elementwise pass.
        field = jnp.fft.ifft2(jnp.fft.fft2(u) * hc)
        roi = field[:, :, sh:sh + rh, sw:sw + rw]           # crop before amplitude
        re = pad_rows(jnp.real(roi).reshape(n_rows, rw))
        im = pad_rows(jnp.imag(roi).reshape(n_rows, rw))
        return roi_loss(s, re, im, tgt)                     # Pallas fused |z|+MSE

    grad_fn = jax.grad(loss_fn, argnums=(0, 1))

    @jax.jit
    def optimize(phase0, tgt):
        def step(_, carry):
            phase, s = carry
            gp, gs = grad_fn(phase, s, tgt)
            return phase - lr * gp, s - lr_s * gs

        phase, _ = lax.fori_loop(0, num_iters, step,
                                 (phase0, jnp.asarray(s0, jnp.float32)))
        return phase

    return optimize(init_phase, tgt_roi)


# ----------------------------------------------------------------------------
if __name__ == "__main__":
    # small, module-consistent shapes: target_amp [batch, 1, H, W]
    B, C, H, W = 2, 1, 32, 32
    ROI = (24, 24)
    PROP_DIST = 0.02            # meters
    WAVELENGTH = 520e-9         # meters
    FEATURE_SIZE = (6.4e-6, 6.4e-6)
    NUM_ITERS = 20

    key = jax.random.PRNGKey(0)
    k1, k2 = jax.random.split(key)
    target_amp = jax.random.uniform(k1, (B, C, H, W), dtype=jnp.float32)
    init_phase = (jax.random.uniform(k2, (B, C, H, W), dtype=jnp.float32)
                  - 0.5) * (2.0 * jnp.pi)

    final_phase = run_sgd(init_phase, target_amp, ROI, PROP_DIST, WAVELENGTH,
                          FEATURE_SIZE, num_iters=NUM_ITERS,
                          lr=0.01, lr_s=0.003, s0=1.0)
    jax.block_until_ready(final_phase)
    assert final_phase.shape == init_phase.shape
    assert jnp.all(jnp.isfinite(final_phase))
    print("KERNEL_OK")
</pallas_src>

<mosaic_0001>
module attributes {stable_mosaic.version = 11 : i64} {
  func.func @_roi_grad_kernel(%arg0: i32, %arg1: memref<1x1xf32, #tpu.memory_space<smem>>, %arg2: memref<1x1xf32, #tpu.memory_space<smem>>, %arg3: memref<48x24xf32, #tpu.memory_space<vmem>>, %arg4: memref<48x24xf32, #tpu.memory_space<vmem>>, %arg5: memref<48x24xf32, #tpu.memory_space<vmem>>, %arg6: memref<48x24xf32, #tpu.memory_space<vmem>>, %arg7: memref<48x24xf32, #tpu.memory_space<vmem>>, %arg8: memref<8x128xf32, #tpu.memory_space<vmem>>) attributes {dimension_semantics = [#tpu.dimension_semantics<parallel>], iteration_bounds = array<i64: 1>, scalar_prefetch = 0 : i64, scratch_operands = 0 : i64, tpu.core_type = #tpu.core_type<tc>, window_params = [{transform_indices = @transform_0, window_bounds = array<i64: 1, 1>}, {transform_indices = @transform_1, window_bounds = array<i64: 1, 1>}, {transform_indices = @transform_2, window_bounds = array<i64: 48, 24>}, {transform_indices = @transform_3, window_bounds = array<i64: 48, 24>}, {transform_indices = @transform_4, window_bounds = array<i64: 48, 24>}, {transform_indices = @transform_5, window_bounds = array<i64: 48, 24>}, {transform_indices = @transform_6, window_bounds = array<i64: 48, 24>}, {transform_indices = @transform_7, window_bounds = array<i64: 8, 128>}]} {
    %c0 = arith.constant 0 : index
    %c0_0 = arith.constant 0 : index
    %0 = memref.load %arg1[%c0, %c0_0] : memref<1x1xf32, #tpu.memory_space<smem>>
    %c0_1 = arith.constant 0 : index
    %c0_2 = arith.constant 0 : index
    %1 = memref.load %arg2[%c0_1, %c0_2] : memref<1x1xf32, #tpu.memory_space<smem>>
    %c0_3 = arith.constant 0 : index
    %c0_4 = arith.constant 0 : index
    %2 = vector.load %arg3[%c0_3, %c0_4] : memref<48x24xf32, #tpu.memory_space<vmem>>, vector<48x24xf32>
    %c0_5 = arith.constant 0 : index
    %c0_6 = arith.constant 0 : index
    %3 = vector.load %arg4[%c0_5, %c0_6] : memref<48x24xf32, #tpu.memory_space<vmem>>, vector<48x24xf32>
    %c0_7 = arith.constant 0 : index
    %c0_8 = arith.constant 0 : index
    %4 = vector.load %arg5[%c0_7, %c0_8] : memref<48x24xf32, #tpu.memory_space<vmem>>, vector<48x24xf32>
    %c48_i32 = arith.constant 48 : i32
    %5 = arith.muli %arg0, %c48_i32 : i32
    %6 = tpu.iota {dimensions = array<i32: 0>} : vector<48x24xi32>
    %7 = vector.broadcast %5 : i32 to vector<48x24xi32>
    %8 = arith.addi %7, %6 : vector<48x24xi32>
    %c48_i32_9 = arith.constant 48 : i32
    %9 = vector.broadcast %c48_i32_9 : i32 to vector<48x24xi32>
    %10 = arith.cmpi slt, %8, %9 : vector<48x24xi32>
    %11 = arith.mulf %2, %2 : vector<48x24xf32>
    %12 = arith.mulf %3, %3 : vector<48x24xf32>
    %13 = arith.addf %11, %12 : vector<48x24xf32>
    %cst = arith.constant 9.99999996E-13 : f32
    %14 = vector.broadcast %cst : f32 to vector<48x24xf32>
    %15 = arith.addf %13, %14 : vector<48x24xf32>
    %16 = math.rsqrt %15 : vector<48x24xf32>
    %17 = arith.mulf %15, %16 : vector<48x24xf32>
    %18 = vector.broadcast %0 : f32 to vector<48x24xf32>
    %19 = arith.mulf %18, %17 : vector<48x24xf32>
    %20 = arith.subf %19, %4 : vector<48x24xf32>
    %21 = vector.broadcast %1 : f32 to vector<48x24xf32>
    %22 = arith.mulf %21, %20 : vector<48x24xf32>
    %23 = arith.mulf %22, %16 : vector<48x24xf32>
    %cst_10 = arith.constant 0.000000e+00 : f32
    %24 = vector.broadcast %cst_10 : f32 to vector<48x24xf32>
    %25 = arith.select %10, %23, %24 : vector<48x24xi1>, vector<48x24xf32>
    %26 = arith.mulf %25, %2 : vector<48x24xf32>
    %c0_11 = arith.constant 0 : index
    %c0_12 = arith.constant 0 : index
    %27 = vector.load %arg6[%c0_11, %c0_12] : memref<48x24xf32, #tpu.memory_space<vmem>>, vector<48x24xf32>
    tpu.vector_store %arg6[%c0_11, %c0_12], %26 {strides = array<i32>} : memref<48x24xf32, #tpu.memory_space<vmem>>, vector<48x24xf32>,
    %28 = arith.mulf %25, %3 : vector<48x24xf32>
    %c0_13 = arith.constant 0 : index
    %c0_14 = arith.constant 0 : index
    %29 = vector.load %arg7[%c0_13, %c0_14] : memref<48x24xf32, #tpu.memory_space<vmem>>, vector<48x24xf32>
    tpu.vector_store %arg7[%c0_13, %c0_14], %28 {strides = array<i32>} : memref<48x24xf32, #tpu.memory_space<vmem>>, vector<48x24xf32>,
    %30 = arith.mulf %20, %17 : vector<48x24xf32>
    %cst_15 = arith.constant 0.000000e+00 : f32
    %31 = vector.broadcast %cst_15 : f32 to vector<48x24xf32>
    %32 = arith.select %10, %30, %31 : vector<48x24xi1>, vector<48x24xf32>
    %33 = vector.shape_cast %32 : vector<48x24xf32> to vector<1x48x24xf32>
    %cst_16 = arith.constant dense<0.000000e+00> : vector<1xf32>
    %34 = vector.multi_reduction <add>, %33, %cst_16 [1, 2] : vector<1x48x24xf32> to vector<1xf32>
    %35 = vector.shape_cast %34 : vector<1xf32> to vector<1x1x1xf32>
    %36 = vector.extract %35[0, 0, 0] : f32 from vector<1x1x1xf32>
    %37 = tpu.iota {dimensions = array<i32: 0>} : vector<8x128xi32>
    %c0_i32 = arith.constant 0 : i32
    %38 = vector.broadcast %c0_i32 : i32 to vector<8x128xi32>
    %39 = arith.cmpi eq, %37, %38 : vector<8x128xi32>
    %40 = tpu.iota {dimensions = array<i32: 1>} : vector<8x128xi32>
    %c0_i32_17 = arith.constant 0 : i32
    %41 = vector.broadcast %c0_i32_17 : i32 to vector<8x128xi32>
    %42 = arith.cmpi eq, %40, %41 : vector<8x128xi32>
    %43 = arith.andi %39, %42 : vector<8x128xi1>
    %cst_18 = arith.constant 0.000000e+00 : f32
    %44 = vector.broadcast %36 : f32 to vector<8x128xf32>
    %45 = vector.broadcast %cst_18 : f32 to vector<8x128xf32>
    %46 = arith.select %43, %44, %45 : vector<8x128xi1>, vector<8x128xf32>
    %c0_19 = arith.constant 0 : index
    %c0_20 = arith.constant 0 : index
    %47 = vector.load %arg8[%c0_19, %c0_20] : memref<8x128xf32, #tpu.memory_space<vmem>>, vector<8x128xf32>
    tpu.vector_store %arg8[%c0_19, %c0_20], %46 {strides = array<i32>} : memref<8x128xf32, #tpu.memory_space<vmem>>, vector<8x128xf32>,
    return
  }
  func.func @transform_0(%arg0: i32) -> (i32, i32) {
    %c0_i32 = arith.constant 0 : i32
    %c0_i32_0 = arith.constant 0 : i32
    %c0_i32_1 = arith.constant 0 : i32
    return %c0_i32, %c0_i32_0 : i32, i32
  }
  func.func @transform_1(%arg0: i32) -> (i32, i32) {
    %c0_i32 = arith.constant 0 : i32
    %c0_i32_0 = arith.constant 0 : i32
    %c0_i32_1 = arith.constant 0 : i32
    return %c0_i32, %c0_i32_0 : i32, i32
  }
  func.func @transform_2(%arg0: i32) -> (i32, i32) {
    %c0_i32 = arith.constant 0 : i32
    %c0_i32_0 = arith.constant 0 : i32
    return %arg0, %c0_i32 : i32, i32
  }
  func.func @transform_3(%arg0: i32) -> (i32, i32) {
    %c0_i32 = arith.constant 0 : i32
    %c0_i32_0 = arith.constant 0 : i32
    return %arg0, %c0_i32 : i32, i32
  }
  func.func @transform_4(%arg0: i32) -> (i32, i32) {
    %c0_i32 = arith.constant 0 : i32
    %c0_i32_0 = arith.constant 0 : i32
    return %arg0, %c0_i32 : i32, i32
  }
  func.func @transform_5(%arg0: i32) -> (i32, i32) {
    %c0_i32 = arith.constant 0 : i32
    %c0_i32_0 = arith.constant 0 : i32
    return %arg0, %c0_i32 : i32, i32
  }
  func.func @transform_6(%arg0: i32) -> (i32, i32) {
    %c0_i32 = arith.constant 0 : i32
    %c0_i32_0 = arith.constant 0 : i32
    return %arg0, %c0_i32 : i32, i32
  }
  func.func @transform_7(%arg0: i32) -> (i32, i32) {
    %c0_i32 = arith.constant 0 : i32
    %c0_i32_0 = arith.constant 0 : i32
    return %c0_i32, %arg0 : i32, i32
  }
}

</mosaic_0001>

<llo_original>
// kernel: neg.15
$region0: #{neg.15}
  #allocation0 [shape = 's32[1]{0}', space=sflag, size = 0x4, scoped, tag = 'scoped memory for neg.15']
  %s0 = inlined_call_operand.vmem [shape: f32[48,24], index: 0, kind: input, shape index: {}]
  %s1 = inlined_call_operand.vmem [shape: f32[48,24], index: 1, kind: output, shape index: {}]
  %v2 = vld [vmem:[%s0] sm:$0xff]
  %3 = xla_tuple %v2
  %4 = xla_tuple %3
  %v5 = vxor.u32 %v2, 2147483648
  %6 = xla_tuple %v5
  %7 = vst [vmem:[%s1] sm:$0xff] %v5
  %s8 = scalar_lea.vmem %s0, 8
  %v9 = vld [vmem:[%s8] sm:$0xff]
  %10 = xla_tuple %v9
  %11 = xla_tuple %10
  %v12 = vxor.u32 %v9, 2147483648
  %13 = xla_tuple %v12
  %s14 = scalar_lea.vmem %s1, 8
  %15 = vst [vmem:[%s14] sm:$0xff] %v12
  %s16 = scalar_lea.vmem %s0, 16
  %v17 = vld [vmem:[%s16] sm:$0xff]
  %18 = xla_tuple %v17
  %19 = xla_tuple %18
  %v20 = vxor.u32 %v17, 2147483648
  %21 = xla_tuple %v20
  %s22 = scalar_lea.vmem %s1, 16
  %23 = vst [vmem:[%s22] sm:$0xff] %v20
  %s24 = scalar_lea.vmem %s0, 24
  %v25 = vld [vmem:[%s24] sm:$0xff]
  %26 = xla_tuple %v25
  %27 = xla_tuple %26
  %v28 = vxor.u32 %v25, 2147483648
  %29 = xla_tuple %v28
  %s30 = scalar_lea.vmem %s1, 24
  %31 = vst [vmem:[%s30] sm:$0xff] %v28
  %s32 = scalar_lea.vmem %s0, 32
  %v33 = vld [vmem:[%s32] sm:$0xff]
  %34 = xla_tuple %v33
  %35 = xla_tuple %34
  %v36 = vxor.u32 %v33, 2147483648
  %37 = xla_tuple %v36
  %s38 = scalar_lea.vmem %s1, 32
  %39 = vst [vmem:[%s38] sm:$0xff] %v36
  %s40 = scalar_lea.vmem %s0, 40
  %v41 = vld [vmem:[%s40] sm:$0xff]
  %42 = xla_tuple %v41
  %43 = xla_tuple %42
  %v44 = vxor.u32 %v41, 2147483648
  %45 = xla_tuple %v44
  %s46 = scalar_lea.vmem %s1, 40
  %47 = vst [vmem:[%s46] sm:$0xff] %v44

</llo_original>
